<compile_context>
chip_gen: v5e
topology: v5e:2x2
jax: 0.10.0
libtpu: 0.0.40
codegen_flags: <defaults>
</compile_context>

<pallas_src>
import jax
import jax.numpy as jnp
from jax.experimental import pallas as pl
from jax.experimental.pallas import tpu as pltpu


def _tanh_kernel(x_ref, o_ref):
    # Elementwise tanh on the current VMEM tile (EUP slot; never the limiter).
    o_ref[...] = jnp.tanh(x_ref[...])


# Minimum sublane tile per element size (f32 -> 8, bf16 -> 16, int8/fp8 -> 32).
_SUBLANE_MIN = {4: 8, 2: 16, 1: 32}


def _choose_layout(total: int, itemsize: int):
    """Pick (lanes, sublane_min, pad) for the flat slab.

    Prefer the widest lane dim that divides `total` exactly (no padding copy,
    wide unmasked vst stores, long contiguous DMAs). Only fall back to padding
    the tail when nothing divides cleanly.
    """
    sub_min = _SUBLANE_MIN.get(itemsize, 8)
    for lanes in (2048, 1024, 512, 256, 128):
        if total % (lanes * sub_min) == 0:
            return lanes, sub_min, 0
    lanes = 512
    chunk = lanes * sub_min
    padded = pl.cdiv(total, chunk) * chunk
    return lanes, sub_min, padded - total


def _pick_row_tile(rows: int, lanes: int, itemsize: int, sub_min: int,
                   target_bytes: int) -> int:
    """Row tile giving ~`target_bytes` per block, (sub_min,128)-aligned."""
    bytes_per_row = lanes * itemsize
    tile = max(sub_min, (target_bytes // bytes_per_row) // sub_min * sub_min)
    if rows >= 2 * sub_min:
        # Keep at least 2 grid steps so both v7x TensorCores get work.
        half = max(sub_min, (rows // 2) // sub_min * sub_min)
        tile = min(tile, half)
    return min(tile, rows)


def tanh_pallas(x: jax.Array, *, target_block_bytes: int = 4 << 20) -> jax.Array:
    """Apply tanh elementwise via a Pallas TPU kernel. Accepts any shape."""
    orig_shape = x.shape
    dtype = x.dtype
    total = x.size
    if total == 0:
        return x
    itemsize = jnp.dtype(dtype).itemsize

    lanes, sub_min, pad = _choose_layout(total, itemsize)

    x_flat = x.reshape(-1)
    if pad:
        # Tail-only padding (tanh(0) == 0, padded values are discarded below).
        x_flat = jnp.pad(x_flat, (0, pad))
    rows = (total + pad) // lanes
    x2d = x_flat.reshape(rows, lanes)

    tile = _pick_row_tile(rows, lanes, itemsize, sub_min, target_block_bytes)
    grid = (pl.cdiv(rows, tile),)  # ragged last block handled by Pallas

    cost = pl.CostEstimate(
        flops=0,
        transcendentals=total,
        bytes_accessed=2 * total * itemsize,
    )

    out2d = pl.pallas_call(
        _tanh_kernel,
        out_shape=jax.ShapeDtypeStruct((rows, lanes), dtype),
        grid_spec=pltpu.PrefetchScalarGridSpec(
            num_scalar_prefetch=0,
            grid=grid,
            in_specs=[pl.BlockSpec((tile, lanes), lambda i: (i, 0))],
            out_specs=pl.BlockSpec((tile, lanes), lambda i: (i, 0)),
        ),
        compiler_params=pltpu.CompilerParams(
            dimension_semantics=("parallel",),
            # ~4 MiB blocks, double-buffered in+out -> ~16 MiB; fits every gen.
            vmem_limit_bytes=32 * 1024 * 1024,
        ),
        cost_estimate=cost,
    )(x2d)

    if pad:
        return out2d.reshape(-1)[:total].reshape(orig_shape)
    # No padding: reshape is a pure metadata view, zero extra HBM traffic.
    return out2d.reshape(orig_shape)


if __name__ == "__main__":
    key = jax.random.PRNGKey(0)
    # NCHW input, consistent with PyTorch conv-style tensors.
    x = jax.random.normal(key, (2, 4, 16, 16), dtype=jnp.float32)

    y = tanh_pallas(x)
    y = jax.block_until_ready(y)

    # Sanity check against plain JAX tanh.
    ref = jnp.tanh(x)
    assert y.shape == x.shape and y.dtype == x.dtype
    assert jnp.max(jnp.abs(y - ref)) < 1e-5

    print("KERNEL_OK")
</pallas_src>

<mosaic_0001>
module attributes {stable_mosaic.version = 11 : i64} {
  func.func @_tanh_kernel(%arg0: i32, %arg1: memref<8x256xf32, #tpu.memory_space<vmem>>, %arg2: memref<8x256xf32, #tpu.memory_space<vmem>>) attributes {dimension_semantics = [#tpu.dimension_semantics<parallel>], iteration_bounds = array<i64: 1>, scalar_prefetch = 0 : i64, scratch_operands = 0 : i64, tpu.core_type = #tpu.core_type<tc>, window_params = [{transform_indices = @transform_0, window_bounds = array<i64: 8, 256>}, {transform_indices = @transform_1, window_bounds = array<i64: 8, 256>}]} {
    %c0 = arith.constant 0 : index
    %c0_0 = arith.constant 0 : index
    %0 = vector.load %arg1[%c0, %c0_0] : memref<8x256xf32, #tpu.memory_space<vmem>>, vector<8x256xf32>
    %1 = math.tanh %0 : vector<8x256xf32>
    %c0_1 = arith.constant 0 : index
    %c0_2 = arith.constant 0 : index
    %2 = vector.load %arg2[%c0_1, %c0_2] : memref<8x256xf32, #tpu.memory_space<vmem>>, vector<8x256xf32>
    tpu.vector_store %arg2[%c0_1, %c0_2], %1 {strides = array<i32>} : memref<8x256xf32, #tpu.memory_space<vmem>>, vector<8x256xf32>,
    return
  }
  func.func @transform_0(%arg0: i32) -> (i32, i32) {
    %c0_i32 = arith.constant 0 : i32
    %c0_i32_0 = arith.constant 0 : i32
    return %arg0, %c0_i32 : i32, i32
  }
  func.func @transform_1(%arg0: i32) -> (i32, i32) {
    %c0_i32 = arith.constant 0 : i32
    %c0_i32_0 = arith.constant 0 : i32
    return %arg0, %c0_i32 : i32, i32
  }
}

</mosaic_0001>

<llo_original>
// kernel: tpu_custom_call.1
$region0: #{tpu_custom_call.1}
  #allocation0 [shape = 'u32[]', space=smem, size = 0x4, offset = 0x4, fixed_abs, tag = 'smem constant byte address 0x4 - core index']
  #allocation1 [shape = 'u32[72,128]{1,0:T(1,128)}', space=vmem, size = 0x9000, scoped, tag = 'internal scratch']
  %s0 = inlined_call_operand.hbm [shape: f32[8,256], index: 0, kind: input, shape index: {}]
  %s1 = inlined_call_operand.hbm [shape: f32[8,256], index: 1, kind: output, shape index: {}]
  %s2 = sld [smem:[#allocation0]]
  $region18: #{tpu_custom_call.1} parent=0
    _
  %s4 = ssub.s32 1, %s2
  %s5 = scalar_select 0, %s4, %s2
  $region1: #{tpu_custom_call.1} parent=0
    #allocation2 [shape = 'u8[8192]{0}', space=vmem, size = 0x2000, scoped, tag = 'input window, operand 0, single buffered']
    #allocation3 [shape = 's32[1]{0}', space=sflag, size = 0x4, scoped, tag = 'scoped memory for tpu_custom_call.1']
    #allocation4 [shape = 's32[1]{0}', space=sflag, size = 0x4, scoped, tag = 'scoped memory for tpu_custom_call.1']
    #allocation5 [shape = 'u8[8192]{0}', space=vmem, size = 0x2000, scoped, tag = 'output window, operand 0, single buffered']
    %6 = vsyncpa [#allocation3], 0
    %7 = vsyncpa [#allocation4], 0
    // Predicated region
    $region2: #{tpu_custom_call.1} parent=1 // pred_check
      _
    $region3: #{tpu_custom_call.1} parent=1 // pred_check_branch
      %9 = sbr.rel (0) target = $region5
    $region4: #{tpu_custom_call.1} parent=1 // pred_region
      %11 = vsyncadd [#allocation3], 0
      %s13 = sshll.u32 %s0, 4
      %s14 = int_to_ptr.hbm [resolvable:$true] %s13
      %s15 = sshll.u32 [#allocation2], 4
      %s16 = int_to_ptr.vmem [resolvable:$true] %s15
      %18 = dma.hbm_to_vmem [thread:$0]  %s14, 256, %s16, [#allocation3]
    $region5: #{tpu_custom_call.1} parent=1 // pred_fallthru
      _
    // Predicated region
    $region6: #{tpu_custom_call.1} parent=1 // pred_check
      _
    $region7: #{tpu_custom_call.1} parent=1 // pred_check_branch
      %20 = sbr.rel (0) target = $region9
    $region8: #{tpu_custom_call.1} parent=1 // pred_region
      %22 = dma.done [#allocation3], 256
    $region9: #{tpu_custom_call.1} parent=1 // pred_fallthru
      _
    %v23 = vld [vmem:[#allocation2] sm:$0xff]
    %v24 = vld [vmem:[#allocation2 + $0x8] sm:$0xff]
    %v25 = vtanh.pop %v23
    %v26 = vtanh.pop %v24
    %27 = vst [vmem:[#allocation5] sm:$0xff] %v25
    %28 = vst [vmem:[#allocation5 + $0x8] sm:$0xff] %v26
    // Predicated region
    $region10: #{tpu_custom_call.1} parent=1 // pred_check
      _
    $region11: #{tpu_custom_call.1} parent=1 // pred_check_branch
      %30 = sbr.rel (0) target = $region13
    $region12: #{tpu_custom_call.1} parent=1 // pred_region
      %32 = vsyncadd [#allocation4], 0
      %s34 = sshll.u32 [#allocation5], 4
      %s35 = int_to_ptr.vmem [resolvable:$true] %s34
      %s36 = sshll.u32 %s1, 4
      %s37 = int_to_ptr.hbm [resolvable:$true] %s36
      %39 = dma.vmem_to_hbm [thread:$0]  %s35, 256, %s37, [#allocation4]
    $region13: #{tpu_custom_call.1} parent=1 // pred_fallthru
      _
    // Predicated region
    $region14: #{tpu_custom_call.1} parent=1 // pred_check
      _
    $region15: #{tpu_custom_call.1} parent=1 // pred_check_branch
      %41 = sbr.rel (0) target = $region17
    $region16: #{tpu_custom_call.1} parent=1 // pred_region
      %43 = dma.done [#allocation4], 256
    $region17: #{tpu_custom_call.1} parent=1 // pred_fallthru
      _
    %44 = vsyncpa [#allocation3], 1
    %45 = vsyncpa [#allocation4], 1

</llo_original>
